<compile_context>
chip_gen: v6e
topology: v6e:2x2x1
jax: 0.10.0
libtpu: 0.0.40
codegen_flags: <defaults>
</compile_context>

<pallas_src>
import jax
import jax.numpy as jnp
import numpy as np
from jax import lax
from jax.experimental import pallas as pl
from jax.experimental.pallas import tpu as pltpu

KERNEL_SIZE = 5
INITIAL_SIGMA = 1.0  # deterministic stand-in for nn.Parameter(initial_sigma)


def _gaussian_taps(kernel_size: int, sigma: jnp.ndarray) -> jnp.ndarray:
    """Matches AdaptiveGaussianFilter.create_gaussian_kernel (returns (K,))."""
    x = jnp.arange(kernel_size, dtype=jnp.float32) - (kernel_size // 2)
    g = jnp.exp(-0.5 * jnp.square(x / sigma))
    return g / jnp.sum(g)


def _softmax_over_lanes(acc):
    """Row-wise softmax over the last (lane) axis of a (TB, T) f32 block."""
    m = jnp.max(acc, axis=1, keepdims=True)
    e = jnp.exp(acc - m)
    s = jnp.sum(e, axis=1, keepdims=True)
    # (TB, 1) reciprocal + broadcast multiply instead of a full-block divide.
    return e * pl.reciprocal(s)


def _agf_kernel_padded(kvec_ref, xp_ref, o_ref):
    """Fallback path: zero-padded frames + static shifted slices.

    kvec_ref: (K,)              f32 SMEM  gaussian taps
    xp_ref:   (TB, T + 2*half)  f32 VMEM  zero-padded frame block
    o_ref:    (TB, T)           f32 VMEM
    """
    T = o_ref.shape[1]
    K = kvec_ref.shape[0]
    xp = xp_ref[...]
    taps = [kvec_ref[k] for k in range(K)]        # hoist SMEM scalar reads
    acc = taps[0] * xp[:, 0:T]                    # init with first tap (no zeros block)
    for k in range(1, K):                         # tiny static K -> fully unrolled MACs
        acc = acc + taps[k] * xp[:, k:k + T]
    o_ref[...] = _softmax_over_lanes(acc)


def _agf_kernel_roll(kvec_ref, x_ref, o_ref):
    """Lane-aligned path: in-kernel shifts via XLU roll, no padded copy, no extra HBM pass.

    kvec_ref: (K,)     f32 SMEM
    x_ref:    (TB, T)  f32 VMEM   (T % 128 == 0)
    o_ref:    (TB, T)  f32 VMEM
    """
    TB, T = o_ref.shape
    K = kvec_ref.shape[0]
    half = K // 2
    x = x_ref[...]
    taps = [kvec_ref[k] for k in range(K)]        # hoist SMEM scalar reads
    idx = lax.broadcasted_iota(jnp.int32, (TB, T), 1)
    acc = taps[half] * x                          # center tap: no shift, no mask
    for k in range(K):
        d = k - half                              # out[:, t] += w[k] * x[:, t + d]
        if d == 0:
            continue
        # pltpu.roll follows jnp.roll semantics: y[:, t] = x[:, (t - shift) % T].
        shifted = pltpu.roll(x, shift=(-d) % T, axis=1)
        valid = (idx >= -d) if d < 0 else (idx < T - d)   # zero the wrapped edge lanes
        acc = acc + taps[k] * jnp.where(valid, shifted, 0.0)
    o_ref[...] = _softmax_over_lanes(acc)


def _pick_batch_tile(batch: int, row_elems: int) -> int:
    """Rows per grid step: keep the double-buffered in+out tiles ~<= 16 MiB."""
    bytes_per_row = 2 * 2 * 4 * row_elems         # 2 buffers x (in + out) x f32
    tile = (16 * 1024 * 1024) // max(bytes_per_row, 1)
    tile = int(max(8, min(tile, 1024)))
    if batch <= tile:
        return batch                              # one block == full batch dim (legal)
    return (tile // 8) * 8                        # sublane-aligned batch tile


def adaptive_gaussian_filter(weights: jnp.ndarray,
                             sigma: jnp.ndarray,
                             kernel_size: int = KERNEL_SIZE,
                             *,
                             batch_tile: int | None = None) -> jnp.ndarray:
    """weights: (B, T, 1) f32 -> (B, T, 1) f32 (gaussian smoothing + softmax over T)."""
    B, T, _ = weights.shape
    half = kernel_size // 2

    kvec = _gaussian_taps(kernel_size, sigma)     # (K,) -> lives in SMEM
    x = weights[..., 0]                           # (B, T)

    if T % 128 == 0:
        # Lane-aligned: shifts done in-kernel with pltpu.roll -> no wrapper pad.
        kern, x_in, t_in = _agf_kernel_roll, x, T
    else:
        # TODO(synk): at arbitrary T the shifts use a zero-padded copy + static
        # slices (one extra HBM pass + per-tap relayouts); an unaligned-T roll or a
        # transposed (T, B) lane-dense layout would remove it.
        kern = _agf_kernel_padded
        x_in = jnp.pad(x, ((0, 0), (half, half)))
        t_in = T + 2 * half

    tb = batch_tile if batch_tile is not None else _pick_batch_tile(B, t_in)
    grid = (pl.cdiv(B, tb),)

    out = pl.pallas_call(
        kern,
        out_shape=jax.ShapeDtypeStruct((B, T), jnp.float32),
        grid=grid,
        in_specs=[
            pl.BlockSpec(memory_space=pltpu.MemorySpace.SMEM),   # gaussian taps (untiled)
            pl.BlockSpec((tb, t_in), lambda i: (i, 0)),          # frame rows, T untiled
        ],
        out_specs=pl.BlockSpec((tb, T), lambda i: (i, 0)),
        compiler_params=pltpu.CompilerParams(
            dimension_semantics=("parallel",),     # shard batch grid across TCs (v7x)
            vmem_limit_bytes=32 * 1024 * 1024,     # explicit; v5e default is only 16 MiB
        ),
    )(kvec, x_in)

    return out[..., None]  # (B, T, 1)


def _reference(weights: jnp.ndarray, sigma: jnp.ndarray,
               kernel_size: int = KERNEL_SIZE) -> jnp.ndarray:
    """Pure-JAX reference mirroring the PyTorch forward."""
    half = kernel_size // 2
    kvec = _gaussian_taps(kernel_size, sigma)
    x = weights[..., 0]                            # (B, T)
    xp = jnp.pad(x, ((0, 0), (half, half)))
    T = x.shape[1]
    y = sum(kvec[k] * xp[:, k:k + T] for k in range(kernel_size))
    return jax.nn.softmax(y, axis=1)[..., None]


if __name__ == "__main__":
    key = jax.random.PRNGKey(0)
    sigma = jnp.float32(INITIAL_SIGMA)

    # (batch, num_frames): the module docstring's example uses num_frames ~ 32.
    cases = [
        dict(B=4, T=32, batch_tile=None),   # single batch block
        dict(B=20, T=32, batch_tile=8),     # multi-step grid + ragged last block
    ]
    for i, c in enumerate(cases):
        w = jax.random.normal(jax.random.fold_in(key, i),
                              (c["B"], c["T"], 1), dtype=jnp.float32)
        out = adaptive_gaussian_filter(w, sigma, batch_tile=c["batch_tile"])
        out = jax.block_until_ready(out)
        ref = _reference(w, sigma)
        assert out.shape == (c["B"], c["T"], 1)
        np.testing.assert_allclose(np.asarray(out), np.asarray(ref),
                                   rtol=1e-5, atol=1e-6)

    print("KERNEL_OK")
</pallas_src>

<mosaic_0001>
module attributes {stable_mosaic.version = 11 : i64} {
  func.func @_agf_kernel_padded(%arg0: i32, %arg1: memref<5xf32, #tpu.memory_space<smem>>, %arg2: memref<4x36xf32, #tpu.memory_space<vmem>>, %arg3: memref<4x32xf32, #tpu.memory_space<vmem>>) attributes {dimension_semantics = [#tpu.dimension_semantics<parallel>], iteration_bounds = array<i64: 1>, scalar_prefetch = 0 : i64, scratch_operands = 0 : i64, tpu.core_type = #tpu.core_type<tc>, window_params = [{transform_indices = @transform_0, window_bounds = array<i64: 5>}, {transform_indices = @transform_1, window_bounds = array<i64: 4, 36>}, {transform_indices = @transform_2, window_bounds = array<i64: 4, 32>}]} {
    %c0 = arith.constant 0 : index
    %c0_0 = arith.constant 0 : index
    %0 = vector.load %arg2[%c0, %c0_0] : memref<4x36xf32, #tpu.memory_space<vmem>>, vector<4x36xf32>
    %c0_1 = arith.constant 0 : index
    %1 = memref.load %arg1[%c0_1] : memref<5xf32, #tpu.memory_space<smem>>
    %c1 = arith.constant 1 : index
    %2 = memref.load %arg1[%c1] : memref<5xf32, #tpu.memory_space<smem>>
    %c2 = arith.constant 2 : index
    %3 = memref.load %arg1[%c2] : memref<5xf32, #tpu.memory_space<smem>>
    %c3 = arith.constant 3 : index
    %4 = memref.load %arg1[%c3] : memref<5xf32, #tpu.memory_space<smem>>
    %c4 = arith.constant 4 : index
    %5 = memref.load %arg1[%c4] : memref<5xf32, #tpu.memory_space<smem>>
    %6 = vector.extract_strided_slice %0 {offsets = [0, 0], sizes = [4, 32], strides = [1, 1]} : vector<4x36xf32> to vector<4x32xf32>
    %7 = vector.broadcast %1 : f32 to vector<4x32xf32>
    %8 = arith.mulf %7, %6 : vector<4x32xf32>
    %9 = vector.extract_strided_slice %0 {offsets = [0, 1], sizes = [4, 32], strides = [1, 1]} : vector<4x36xf32> to vector<4x32xf32>
    %10 = vector.broadcast %2 : f32 to vector<4x32xf32>
    %11 = arith.mulf %10, %9 : vector<4x32xf32>
    %12 = arith.addf %8, %11 : vector<4x32xf32>
    %13 = vector.extract_strided_slice %0 {offsets = [0, 2], sizes = [4, 32], strides = [1, 1]} : vector<4x36xf32> to vector<4x32xf32>
    %14 = vector.broadcast %3 : f32 to vector<4x32xf32>
    %15 = arith.mulf %14, %13 : vector<4x32xf32>
    %16 = arith.addf %12, %15 : vector<4x32xf32>
    %17 = vector.extract_strided_slice %0 {offsets = [0, 3], sizes = [4, 32], strides = [1, 1]} : vector<4x36xf32> to vector<4x32xf32>
    %18 = vector.broadcast %4 : f32 to vector<4x32xf32>
    %19 = arith.mulf %18, %17 : vector<4x32xf32>
    %20 = arith.addf %16, %19 : vector<4x32xf32>
    %21 = vector.extract_strided_slice %0 {offsets = [0, 4], sizes = [4, 32], strides = [1, 1]} : vector<4x36xf32> to vector<4x32xf32>
    %22 = vector.broadcast %5 : f32 to vector<4x32xf32>
    %23 = arith.mulf %22, %21 : vector<4x32xf32>
    %24 = arith.addf %20, %23 : vector<4x32xf32>
    %cst = arith.constant dense<0xFF800000> : vector<4xf32>
    %25 = vector.multi_reduction <maximumf>, %24, %cst [1] : vector<4x32xf32> to vector<4xf32>
    %26 = vector.shape_cast %25 : vector<4xf32> to vector<4x1xf32>
    %27 = vector.broadcast %26 : vector<4x1xf32> to vector<4x32xf32>
    %28 = arith.subf %24, %27 : vector<4x32xf32>
    %29 = math.exp %28 : vector<4x32xf32>
    %cst_2 = arith.constant dense<0.000000e+00> : vector<4xf32>
    %30 = vector.multi_reduction <add>, %29, %cst_2 [1] : vector<4x32xf32> to vector<4xf32>
    %31 = vector.shape_cast %30 : vector<4xf32> to vector<4x1xf32>
    %32 = tpu.reciprocal %31 : vector<4x1xf32> -> vector<4x1xf32>
    %33 = vector.broadcast %32 : vector<4x1xf32> to vector<4x32xf32>
    %34 = arith.mulf %29, %33 : vector<4x32xf32>
    %c0_3 = arith.constant 0 : index
    %c0_4 = arith.constant 0 : index
    %35 = vector.load %arg3[%c0_3, %c0_4] : memref<4x32xf32, #tpu.memory_space<vmem>>, vector<4x32xf32>
    tpu.vector_store %arg3[%c0_3, %c0_4], %34 {strides = array<i32>} : memref<4x32xf32, #tpu.memory_space<vmem>>, vector<4x32xf32>,
    return
  }
  func.func @transform_0(%arg0: i32) -> i32 {
    %c0_i32 = arith.constant 0 : i32
    %c0_i32_0 = arith.constant 0 : i32
    return %c0_i32 : i32
  }
  func.func @transform_1(%arg0: i32) -> (i32, i32) {
    %c0_i32 = arith.constant 0 : i32
    %c0_i32_0 = arith.constant 0 : i32
    return %arg0, %c0_i32 : i32, i32
  }
  func.func @transform_2(%arg0: i32) -> (i32, i32) {
    %c0_i32 = arith.constant 0 : i32
    %c0_i32_0 = arith.constant 0 : i32
    return %arg0, %c0_i32 : i32, i32
  }
}

</mosaic_0001>

<llo_original>
// kernel: tpu_custom_call.1
$region0: #{tpu_custom_call.1}
  #allocation0 [shape = 'u32[]', space=smem, size = 0x4, offset = 0x4, fixed_abs, tag = 'smem constant byte address 0x4 - core index']
  #allocation1 [shape = 'u32[144,128]{1,0:T(1,128)}', space=vmem, size = 0x12000, scoped, tag = 'internal scratch']
  %s0 = inlined_call_operand.hbm [shape: f32[5], index: 0, kind: input, shape index: {}]
  %s1 = inlined_call_operand.hbm [shape: f32[4,36], index: 1, kind: input, shape index: {}]
  %s2 = inlined_call_operand.hbm [shape: f32[4,32], index: 2, kind: output, shape index: {}]
  %s3 = sld [smem:[#allocation0]]
  $region26: #{tpu_custom_call.1} parent=0
    _
  %s5 = ssub.s32 1, %s3
  %s6 = scalar_select 0, %s5, %s3
  $region1: #{tpu_custom_call.1} parent=0
    #allocation2 [shape = 'u8[512]{0}', space=smem, size = 0x200, scoped, tag = 'input window, operand 0, single buffered']
    #allocation3 [shape = 's32[1]{0}', space=sflag, size = 0x4, scoped, tag = 'scoped memory for tpu_custom_call.1']
    #allocation4 [shape = 's32[1]{0}', space=sflag, size = 0x4, scoped, tag = 'scoped memory for tpu_custom_call.1']
    #allocation5 [shape = 's32[1]{0}', space=sflag, size = 0x4, scoped, tag = 'scoped memory for tpu_custom_call.1']
    #allocation6 [shape = 'u8[2048]{0}', space=vmem, size = 0x800, scoped, tag = 'input window, operand 1, single buffered']
    #allocation7 [shape = 'u8[2048]{0}', space=vmem, size = 0x800, scoped, tag = 'output window, operand 0, single buffered']
    %7 = vsyncpa [#allocation5], 0
    %8 = vsyncpa [#allocation3], 0
    %9 = vsyncpa [#allocation4], 0
    // Predicated region
    $region2: #{tpu_custom_call.1} parent=1 // pred_check
      _
    $region3: #{tpu_custom_call.1} parent=1 // pred_check_branch
      %11 = sbr.rel (0) target = $region5
    $region4: #{tpu_custom_call.1} parent=1 // pred_region
      %s13 = ssub.s32 16, 16
      %14 = vsyncadd [#allocation5], %s13
      %17 = dma.hbm_to_smem %s0, 16, [#allocation2], [#allocation5]
    $region5: #{tpu_custom_call.1} parent=1 // pred_fallthru
      _
    // Predicated region
    $region6: #{tpu_custom_call.1} parent=1 // pred_check
      _
    $region7: #{tpu_custom_call.1} parent=1 // pred_check_branch
      %19 = sbr.rel (0) target = $region9
    $region8: #{tpu_custom_call.1} parent=1 // pred_region
      %s21 = ssub.s32 64, 64
      %22 = vsyncadd [#allocation3], %s21
      %s24 = sshll.u32 [#allocation6], 4
      %s25 = int_to_ptr.vmem [resolvable:$true] %s24
      %27 = dma.hbm_to_vmem [thread:$0]  %s1, 64, %s25, [#allocation3]
    $region9: #{tpu_custom_call.1} parent=1 // pred_fallthru
      _
    // Predicated region
    $region10: #{tpu_custom_call.1} parent=1 // pred_check
      _
    $region11: #{tpu_custom_call.1} parent=1 // pred_check_branch
      %29 = sbr.rel (0) target = $region13
    $region12: #{tpu_custom_call.1} parent=1 // pred_region
      %30 = dma.done [#allocation5], 16
    $region13: #{tpu_custom_call.1} parent=1 // pred_fallthru
      _
    // Predicated region
    $region14: #{tpu_custom_call.1} parent=1 // pred_check
      _
    $region15: #{tpu_custom_call.1} parent=1 // pred_check_branch
      %32 = sbr.rel (0) target = $region17
    $region16: #{tpu_custom_call.1} parent=1 // pred_region
      %33 = dma.done [#allocation3], 64
    $region17: #{tpu_custom_call.1} parent=1 // pred_fallthru
      _
    %34 = sfence
    %v35 = vld [vmem:[#allocation6] sm:$0xf]
    %s36 = sld [smem:[#allocation2]]
    %s37 = sld [smem:[#allocation2 + $0x1]]
    %s38 = sld [smem:[#allocation2 + $0x2]]
    %s39 = sld [smem:[#allocation2 + $0x3]]
    %s40 = sld [smem:[#allocation2 + $0x4]]
    %v41 = vstv %s36
    %v42 = vmul.f32 %v41, %v35
    %v43 = vstv %s37
    %v44 = vmul.f32 %v43, %v35
    %46 = vrot.lane.b32.xlu0 %v44, 127
    %v47 = vpop.permute.xlu0 %46
    %v49 = vadd.f32 %v42, %v47
    %v50 = vstv %s38
    %v51 = vmul.f32 %v50, %v35
    %53 = vrot.lane.b32.xlu0 %v51, 126
    %v54 = vpop.permute.xlu0 %53
    %v56 = vadd.f32 %v49, %v54
    %v57 = vstv %s39
    %v58 = vmul.f32 %v57, %v35
    %60 = vrot.lane.b32.xlu0 %v58, 125
    %v61 = vpop.permute.xlu0 %60
    %v63 = vadd.f32 %v56, %v61
    %v64 = vstv %s40
    %v65 = vmul.f32 %v64, %v35
    %67 = vrot.lane.b32.xlu0 %v65, 124
    %v68 = vpop.permute.xlu0 %67
    %v70 = vadd.f32 %v63, %v68
    %vm71 = vcmask 257024
    %v72 = vsel %vm71, %v70, -inf
    %73 = vmax.xlane.f32.xlu0 %v72
    %v74 = vpop.xlane.xlu0 %73
    %v75 = vsub.f32 %v70, %v74
    %v76 = vmul.f32 %v75, 1.442695
    %v77 = vpow.pop %v76
    %v78 = vsel %vm71, %v77, 0.0
    %79 = vadd.xlane.f32.xlu0 %v78
    %v80 = vpop.xlane.xlu0 %79
    %v81 = vrcp.pop %v80
    %v82 = vmul.f32 %v77, %v81
    %83 = vst.msk [vmem:[#allocation7] sm:$0xf] %vm71, %v82
    // Predicated region
    $region18: #{tpu_custom_call.1} parent=1 // pred_check
      _
    $region19: #{tpu_custom_call.1} parent=1 // pred_check_branch
      %85 = sbr.rel (0) target = $region21
    $region20: #{tpu_custom_call.1} parent=1 // pred_region
      %s87 = ssub.s32 64, 64
      %88 = vsyncadd [#allocation4], %s87
      %s90 = sshll.u32 [#allocation7], 4
      %s91 = int_to_ptr.vmem [resolvable:$true] %s90
      %93 = dma.vmem_to_hbm [thread:$0]  %s91, 64, %s2, [#allocation4]
    $region21: #{tpu_custom_call.1} parent=1 // pred_fallthru
      _
    // Predicated region
    $region22: #{tpu_custom_call.1} parent=1 // pred_check
      _
    $region23: #{tpu_custom_call.1} parent=1 // pred_check_branch
      %95 = sbr.rel (0) target = $region25
    $region24: #{tpu_custom_call.1} parent=1 // pred_region
      %96 = dma.done [#allocation4], 64
    $region25: #{tpu_custom_call.1} parent=1 // pred_fallthru
      _
    %97 = vsyncpa [#allocation3], 1
    %98 = vsyncpa [#allocation4], 1
    %99 = vsyncpa [#allocation5], 1

</llo_original>
